<compile_context>
chip_gen: v7x
topology: tpu7x:2x2x1
jax: 0.10.0
libtpu: 0.0.40
codegen_flags: <defaults>
</compile_context>

<pallas_src>
import functools

import jax
import jax.numpy as jnp
from jax.experimental import pallas as pl
from jax.experimental.pallas import tpu as pltpu


def _round_up(x, m):
    return ((x + m - 1) // m) * m


# ---------------------------------------------------------------------------
# Fused losses_G kernel
# ---------------------------------------------------------------------------
def _losses_kernel(cat_ref, x_ref, wt_ref, bias_ref, o_ref, *, hw, padded):
    del cat_ref  # only consumed by the index_maps
    i = pl.program_id(1)

    @pl.when(i == 0)
    def _():
        # Output block is VMEM-resident across the pixel-tile axis for each b;
        # zero it once per batch row and accumulate in place (no scratch).
        o_ref[...] = jnp.zeros_like(o_ref)

    t = x_ref[0]                       # (C, TP) one-hot semantics == real_aug
    c, tp = t.shape
    bias = bias_ref[0][:, 0:1]         # (2C, 1) = b_g + cat_emb[cat[b]]

    # Surrogate generator: 1x1 conv == per-pixel matmul (tiny K, negligible
    # FLOPs; fused so the (2C, TP) logits never round-trip through HBM).
    y = jnp.dot(wt_ref[...], t, preferred_element_type=jnp.float32) + bias   # (2C, TP)

    def branch(yb):
        """Per-pixel BCE channel-sum and CE for one (C, TP) logits block."""
        # Shared target-logit term: real_aug is one-hot, so sum_c t*y == y[tgt].
        ty = jnp.sum(t * yb, axis=0, keepdims=True)                     # (1, TP)

        # BCE: sum_c softplus(y_c) - sum_c t_c*y_c, with the channel log folded:
        #   sum_c log1p(e_c) == log(prod_c (1 + e_c)),  e_c = exp(-|y_c|) in (0,1]
        # so C logs per pixel become 1 (factors in [1,2]: no over/underflow).
        # TODO(synk): torch F.binary_cross_entropy clamps log terms at -100;
        # only differs for |logit| > ~100, which never occurs here.
        relu = jnp.sum(jnp.maximum(yb, 0.0), axis=0, keepdims=True)     # (1, TP)
        u1 = 1.0 + jnp.exp(-jnp.abs(yb))                                # (C, TP)
        prod = u1[0:1, :]
        for k in range(1, c):          # static sublane slices; cheap VPU muls
            prod = prod * u1[k:k + 1, :]
        bce = relu + jnp.log(prod) - ty                                 # (1, TP)

        # Per-pixel CE vs argmax(real_aug) (one-hot target).
        m = jnp.max(yb, axis=0, keepdims=True)                          # (1, TP)
        s = jnp.sum(jnp.exp(yb - m), axis=0, keepdims=True)
        ce = m + jnp.log(s) - ty                                        # (1, TP)
        return bce, ce

    bce_f, ce_f = branch(y[:c, :])
    bce_r, ce_r = branch(y[c:, :])

    if padded:
        col = jax.lax.broadcasted_iota(jnp.int32, (1, tp), 1) + i * tp
        valid = (col < hw).astype(jnp.float32)                          # (1, TP)
        bce_f = bce_f * valid
        bce_r = bce_r * valid
        ce_f = ce_f * valid
        ce_r = ce_r * valid

    # Lane reduces (one XLU vreg-reduce each after the VPU fold over TP).
    s0 = jnp.sum(bce_f, axis=1, keepdims=True)      # (1, 1)
    s1 = jnp.sum(bce_r, axis=1, keepdims=True)
    s2 = jnp.sum(ce_f, axis=1, keepdims=True)
    s3 = jnp.sum(ce_r, axis=1, keepdims=True)

    row = jax.lax.broadcasted_iota(jnp.int32, (8, 128), 0)
    lane = jax.lax.broadcasted_iota(jnp.int32, (8, 128), 1)
    contrib = (jnp.where((row == 0) & (lane == 0), s0, 0.0)
               + jnp.where((row == 0) & (lane == 1), s1, 0.0)
               + jnp.where((row == 0) & (lane == 2), s2, 0.0)
               + jnp.where((row == 0) & (lane == 3), s3, 0.0))
    o_ref[...] += contrib[None]


def oasis_losses_fused(x_pad, w_t, eff_bias, cat, *, hw, tp):
    bsz, c, hwp = x_pad.shape
    two_c, _ = w_t.shape
    kernel = functools.partial(_losses_kernel, hw=hw, padded=(hwp != hw))
    out = pl.pallas_call(
        kernel,
        out_shape=jax.ShapeDtypeStruct((bsz, 8, 128), jnp.float32),
        grid_spec=pltpu.PrefetchScalarGridSpec(
            num_scalar_prefetch=1,
            grid=(bsz, hwp // tp),
            in_specs=[
                pl.BlockSpec((1, c, tp), lambda b, i, cat_r: (b, 0, i)),
                pl.BlockSpec((two_c, c), lambda b, i, cat_r: (0, 0)),
                pl.BlockSpec((1, two_c, 128), lambda b, i, cat_r: (cat_r[b], 0, 0)),
            ],
            out_specs=pl.BlockSpec((1, 8, 128), lambda b, i, cat_r: (b, 0, 0)),
        ),
        compiler_params=pltpu.CompilerParams(
            # Batch axis is genuinely independent (per-batch partial rows), so
            # it shards across the two TensorCores on v7x; the pixel-tile axis
            # revisits the same output block and must stay 'arbitrary'.
            dimension_semantics=("parallel", "arbitrary")),
    )(cat, x_pad, w_t, eff_bias)
    # Per-batch partial rows -> 4 loss sums (sublane 0, lanes 0..3).
    return jnp.sum(out[:, 0, :4], axis=0)


# ---------------------------------------------------------------------------
# Generator-only kernel (for 'generate' / 'generate_withvis' modes)
# ---------------------------------------------------------------------------
def _gen_kernel(cat_ref, x_ref, wt_ref, bias_ref, y_ref):
    del cat_ref
    x = x_ref[0]                       # (C, TP)
    bias = bias_ref[0][:, 0:1]         # (C, 1)  -- fake half only
    y_ref[0] = jnp.dot(wt_ref[...], x, preferred_element_type=jnp.float32) + bias


def oasis_generate_fused(x_pad, w_t_fake, eff_bias_fake, cat, *, tp):
    bsz, c, hwp = x_pad.shape
    c_out, _ = w_t_fake.shape          # == c: only the 'fake' half is written
    return pl.pallas_call(
        _gen_kernel,
        out_shape=jax.ShapeDtypeStruct((bsz, c_out, hwp), jnp.float32),
        grid_spec=pltpu.PrefetchScalarGridSpec(
            num_scalar_prefetch=1,
            grid=(bsz, hwp // tp),
            in_specs=[
                pl.BlockSpec((1, c, tp), lambda b, i, cat_r: (b, 0, i)),
                pl.BlockSpec((c_out, c), lambda b, i, cat_r: (0, 0)),
                pl.BlockSpec((1, c_out, 128), lambda b, i, cat_r: (cat_r[b], 0, 0)),
            ],
            out_specs=pl.BlockSpec((1, c_out, tp), lambda b, i, cat_r: (b, 0, i)),
        ),
        compiler_params=pltpu.CompilerParams(
            dimension_semantics=("parallel", "parallel")),
    )(cat, x_pad, w_t_fake, eff_bias_fake)


# ---------------------------------------------------------------------------
# OASIS model (forward-only, synthetic deterministic weights)
# ---------------------------------------------------------------------------
class OASISModelPallas:
    """Forward-only OASIS model with a surrogate generator.

    TODO(synk): generators.PartGeneratorAttn is external to the given module;
    the stand-in generator is a 1x1 conv (C -> 2C) plus a per-category
    embedding, with real_aug == the one-hot semantics map.
    """

    def __init__(self, num_classes=8, num_cat=5, key=jax.random.PRNGKey(42),
                 tile_pixels=32768):
        self.c = num_classes
        # 32768 pixels * 8 ch * 4 B = 1 MiB per input block (x2 double-buffer);
        # the generate kernel adds a same-size output block -> ~4 MiB/step,
        # comfortably under the 32 MiB scoped VMEM default on v5e/v6e/v7x.
        self.tile_pixels = tile_pixels
        k1, k2 = jax.random.split(key)
        gain = 0.02                                   # init_weights xavier gain
        fan_in, fan_out = num_classes, 2 * num_classes
        std = gain * (2.0 / (fan_in + fan_out)) ** 0.5
        self.w_g = std * jax.random.normal(k1, (fan_in, fan_out), jnp.float32)
        self.b_g = jnp.zeros((1, fan_out), jnp.float32)          # bias init 0
        self.cat_emb = 0.01 * jax.random.normal(k2, (num_cat, fan_out), jnp.float32)

        # Hoisted kernel-side constants (VMEM-resident during the call).
        self.w_t = jnp.transpose(self.w_g)                        # (2C, C)
        eff = self.b_g + self.cat_emb                             # (num_cat, 2C)
        self.eff_bias = jnp.broadcast_to(
            eff[:, :, None], (num_cat, fan_out, 128)).astype(jnp.float32)
        # 'fake'-only weights/bias for the generate path (half the HBM writes).
        self.w_t_fake = self.w_t[:num_classes]                    # (C, C)
        self.eff_bias_fake = self.eff_bias[:, :num_classes, :]    # (num_cat, C, 128)

    # -- helpers -------------------------------------------------------------
    def _prep_pixels(self, input_semantics):
        b, c, h, w = input_semantics.shape
        hw = h * w
        n_tiles = -(-hw // self.tile_pixels)
        tp = _round_up(-(-hw // n_tiles), 128)        # lane-tile (pixels/step)
        hwp = tp * n_tiles
        x = input_semantics.reshape(b, c, hw)         # NCHW -> (B, C, HW): no transpose
        if hwp != hw:
            x = jnp.pad(x, ((0, 0), (0, 0), (0, hwp - hw)))
        return x, hw, tp

    # -- losses_G ------------------------------------------------------------
    def _losses_G(self, input_semantics, cat):
        x, hw, tp = self._prep_pixels(input_semantics)
        b, c, _ = x.shape
        sums = oasis_losses_fused(x, self.w_t, self.eff_bias,
                                  cat.astype(jnp.int32), hw=hw, tp=tp)
        n_pix = b * hw
        loss_bce = sums[0] / (n_pix * c)              # mean over B*C*H*W elements
        loss_bce_rec = sums[1] / (n_pix * c)
        loss_ce = sums[2] / n_pix                     # mean over B*H*W pixels
        loss_ce_rec = sums[3] / n_pix
        return loss_bce, loss_bce_rec, loss_ce, loss_ce_rec

    # -- generate ------------------------------------------------------------
    def _generate(self, input_semantics, cat):
        b, c, h, w = input_semantics.shape
        x, hw, tp = self._prep_pixels(input_semantics)
        y = oasis_generate_fused(x, self.w_t_fake, self.eff_bias_fake,
                                 cat.astype(jnp.int32), tp=tp)
        fake = y[:, :, :hw]
        return fake.reshape(b, c, h, w)

    # -- forward ---------------------------------------------------------------
    def forward(self, image, labels, mode):
        input_semantics, real_image, cat, weight = labels
        b = input_semantics.shape[0]
        # Parity with the reference forward; weight_bce / weight_ce are built
        # there but never consumed by any returned loss.
        weight = jax.nn.softmax(weight, axis=0) * b

        if mode == 'losses_G':
            l_bce, l_bce_rec, l_ce, l_ce_rec = self._losses_G(input_semantics, cat)
            loss_G = l_bce + l_bce_rec + l_ce + l_ce_rec
            return loss_G, [l_bce, l_bce_rec, l_ce, l_ce_rec]

        if mode in ('generate', 'generate_withvis'):
            return self._generate(input_semantics, cat)

        raise ValueError(mode)


# ---------------------------------------------------------------------------
if __name__ == "__main__":
    B, C, H, W = 2, 8, 16, 16
    NUM_CAT = 5
    key = jax.random.PRNGKey(0)
    k1, k2, k3, k4 = jax.random.split(key, 4)

    sem_idx = jax.random.randint(k1, (B, H, W), 0, C)
    input_semantics = jnp.transpose(
        jax.nn.one_hot(sem_idx, C, dtype=jnp.float32), (0, 3, 1, 2))  # (B,C,H,W)
    real_image = jax.random.normal(k2, (B, 3, H, W), jnp.float32)
    cat = jax.random.randint(k3, (B,), 0, NUM_CAT)
    weight = jax.random.normal(k4, (B,), jnp.float32)
    image = real_image                                  # unused in losses_G path

    model = OASISModelPallas(num_classes=C, num_cat=NUM_CAT)
    labels = (input_semantics, real_image, cat, weight)

    loss_G, loss_list = model.forward(image, labels, 'losses_G')
    loss_G = jax.block_until_ready(loss_G)
    loss_list = [jax.block_until_ready(l) for l in loss_list]

    fake_img = jax.block_until_ready(model.forward(image, labels, 'generate'))

    # ---- pure-JAX reference (same surrogate generator, jnp losses) ---------
    x_rm = jnp.transpose(input_semantics, (0, 2, 3, 1)).reshape(B * H * W, C)
    y_rm = x_rm @ model.w_g + model.b_g
    y_rm = (y_rm.reshape(B, H * W, 2 * C) + model.cat_emb[cat][:, None, :]
            ).reshape(B * H * W, 2 * C)
    fake_r, rec_r, targ_r = y_rm[:, :C], y_rm[:, C:], x_rm

    def ref_bce(logits):
        p = jax.nn.sigmoid(logits)
        return jnp.mean(-(targ_r * jnp.log(p) + (1.0 - targ_r) * jnp.log(1.0 - p)))

    def ref_ce(logits):
        tgt = jnp.argmax(targ_r, axis=-1)
        logp = jax.nn.log_softmax(logits, axis=-1)
        return jnp.mean(-jnp.take_along_axis(logp, tgt[:, None], axis=-1))

    ref = [ref_bce(fake_r), ref_bce(rec_r), ref_ce(fake_r), ref_ce(rec_r)]
    for got, want in zip(loss_list, ref):
        assert jnp.allclose(got, want, rtol=1e-3, atol=1e-5), (got, want)
    assert jnp.allclose(loss_G, sum(ref), rtol=1e-3, atol=1e-5), (loss_G, sum(ref))

    fake_ref_img = jnp.transpose(fake_r.reshape(B, H, W, C), (0, 3, 1, 2))
    assert jnp.allclose(fake_img, fake_ref_img, rtol=1e-2, atol=1e-4), (
        float(jnp.max(jnp.abs(fake_img - fake_ref_img))))

    print("KERNEL_OK")
</pallas_src>

<mosaic_0001>
module attributes {stable_mosaic.version = 11 : i64} {
  func.func @_losses_kernel(%arg0: i32, %arg1: i32, %arg2: memref<2xi32, #tpu.memory_space<smem>>, %arg3: memref<1x8x256xf32, #tpu.memory_space<vmem>>, %arg4: memref<16x8xf32, #tpu.memory_space<vmem>>, %arg5: memref<1x16x128xf32, #tpu.memory_space<vmem>>, %arg6: memref<1x8x128xf32, #tpu.memory_space<vmem>>) attributes {dimension_semantics = [#tpu.dimension_semantics<parallel>, #tpu.dimension_semantics<arbitrary>], iteration_bounds = array<i64: 2, 1>, scalar_prefetch = 1 : i64, scratch_operands = 0 : i64, tpu.core_type = #tpu.core_type<tc>, window_params = [{transform_indices = @transform_0, window_bounds = array<i64: 1, 8, 256>}, {pipeline_mode = #tpu.pipeline_mode<synchronous>, transform_indices = @transform_1, window_bounds = array<i64: 16, 8>}, {transform_indices = @transform_2, window_bounds = array<i64: 1, 16, 128>}, {transform_indices = @transform_3, window_bounds = array<i64: 1, 8, 128>}]} {
    %c0_i32 = arith.constant 0 : i32
    %0 = arith.cmpi eq, %arg1, %c0_i32 : i32
    %1 = arith.extui %0 : i1 to i32
    %c0_i32_0 = arith.constant 0 : i32
    %2 = arith.cmpi ne, %1, %c0_i32_0 : i32
    scf.if %2 {
      %cst_41 = arith.constant 0.000000e+00 : f32
      %149 = vector.broadcast %cst_41 : f32 to vector<1x8x128xf32>
      %c0_42 = arith.constant 0 : index
      %c0_43 = arith.constant 0 : index
      %c0_44 = arith.constant 0 : index
      %150 = vector.load %arg6[%c0_42, %c0_43, %c0_44] : memref<1x8x128xf32, #tpu.memory_space<vmem>>, vector<1x8x128xf32>
      tpu.vector_store %arg6[%c0_42, %c0_43, %c0_44], %149 {strides = array<i32>} : memref<1x8x128xf32, #tpu.memory_space<vmem>>, vector<1x8x128xf32>,
    } else {
    }
    %c0 = arith.constant 0 : index
    %c0_1 = arith.constant 0 : index
    %c0_2 = arith.constant 0 : index
    %3 = vector.load %arg3[%c0, %c0_1, %c0_2] : memref<1x8x256xf32, #tpu.memory_space<vmem>>, vector<1x8x256xf32>
    %4 = vector.shape_cast %3 : vector<1x8x256xf32> to vector<8x256xf32>
    %c0_3 = arith.constant 0 : index
    %c0_4 = arith.constant 0 : index
    %c0_5 = arith.constant 0 : index
    %5 = vector.load %arg5[%c0_3, %c0_4, %c0_5] : memref<1x16x128xf32, #tpu.memory_space<vmem>>, vector<1x16x128xf32>
    %6 = vector.shape_cast %5 : vector<1x16x128xf32> to vector<16x128xf32>
    %7 = vector.extract_strided_slice %6 {offsets = [0, 0], sizes = [16, 1], strides = [1, 1]} : vector<16x128xf32> to vector<16x1xf32>
    %c0_6 = arith.constant 0 : index
    %c0_7 = arith.constant 0 : index
    %8 = vector.load %arg4[%c0_6, %c0_7] : memref<16x8xf32, #tpu.memory_space<vmem>>, vector<16x8xf32>
    %cst = arith.constant dense<0.000000e+00> : vector<16x256xf32>
    %9 = tpu.matmul %8, %4, %cst {dimension_numbers = #tpu.dot_dimension_numbers<[1], [0], [0], [1], [0, 0, 1, 1], [], []>} : vector<16x8xf32>, vector<8x256xf32>, vector<16x256xf32> -> vector<16x256xf32>
    %10 = vector.broadcast %7 : vector<16x1xf32> to vector<16x256xf32>
    %11 = arith.addf %9, %10 : vector<16x256xf32>
    %12 = vector.extract_strided_slice %11 {offsets = [0, 0], sizes = [8, 256], strides = [1, 1]} : vector<16x256xf32> to vector<8x256xf32>
    %13 = arith.mulf %4, %12 : vector<8x256xf32>
    %cst_8 = arith.constant dense<0.000000e+00> : vector<256xf32>
    %14 = vector.multi_reduction <add>, %13, %cst_8 [0] : vector<8x256xf32> to vector<256xf32>
    %15 = vector.shape_cast %14 : vector<256xf32> to vector<1x256xf32>
    %cst_9 = arith.constant 0.000000e+00 : f32
    %16 = vector.broadcast %cst_9 : f32 to vector<8x256xf32>
    %17 = arith.maximumf %12, %16 : vector<8x256xf32>
    %cst_10 = arith.constant dense<0.000000e+00> : vector<256xf32>
    %18 = vector.multi_reduction <add>, %17, %cst_10 [0] : vector<8x256xf32> to vector<256xf32>
    %19 = vector.shape_cast %18 : vector<256xf32> to vector<1x256xf32>
    %20 = math.absf %12 : vector<8x256xf32>
    %cst_11 = arith.constant 0.000000e+00 : f32
    %21 = vector.broadcast %cst_11 : f32 to vector<8x256xf32>
    %22 = arith.subf %21, %20 : vector<8x256xf32>
    %23 = math.exp %22 : vector<8x256xf32>
    %cst_12 = arith.constant 1.000000e+00 : f32
    %24 = vector.broadcast %cst_12 : f32 to vector<8x256xf32>
    %25 = arith.addf %24, %23 : vector<8x256xf32>
    %26 = vector.extract_strided_slice %25 {offsets = [0, 0], sizes = [1, 256], strides = [1, 1]} : vector<8x256xf32> to vector<1x256xf32>
    %27 = vector.extract_strided_slice %25 {offsets = [1, 0], sizes = [1, 256], strides = [1, 1]} : vector<8x256xf32> to vector<1x256xf32>
    %28 = arith.mulf %26, %27 : vector<1x256xf32>
    %29 = vector.extract_strided_slice %25 {offsets = [2, 0], sizes = [1, 256], strides = [1, 1]} : vector<8x256xf32> to vector<1x256xf32>
    %30 = arith.mulf %28, %29 : vector<1x256xf32>
    %31 = vector.extract_strided_slice %25 {offsets = [3, 0], sizes = [1, 256], strides = [1, 1]} : vector<8x256xf32> to vector<1x256xf32>
    %32 = arith.mulf %30, %31 : vector<1x256xf32>
    %33 = vector.extract_strided_slice %25 {offsets = [4, 0], sizes = [1, 256], strides = [1, 1]} : vector<8x256xf32> to vector<1x256xf32>
    %34 = arith.mulf %32, %33 : vector<1x256xf32>
    %35 = vector.extract_strided_slice %25 {offsets = [5, 0], sizes = [1, 256], strides = [1, 1]} : vector<8x256xf32> to vector<1x256xf32>
    %36 = arith.mulf %34, %35 : vector<1x256xf32>
    %37 = vector.extract_strided_slice %25 {offsets = [6, 0], sizes = [1, 256], strides = [1, 1]} : vector<8x256xf32> to vector<1x256xf32>
    %38 = arith.mulf %36, %37 : vector<1x256xf32>
    %39 = vector.extract_strided_slice %25 {offsets = [7, 0], sizes = [1, 256], strides = [1, 1]} : vector<8x256xf32> to vector<1x256xf32>
    %40 = arith.mulf %38, %39 : vector<1x256xf32>
    %41 = math.log %40 : vector<1x256xf32>
    %42 = arith.addf %19, %41 : vector<1x256xf32>
    %43 = arith.subf %42, %15 : vector<1x256xf32>
    %cst_13 = arith.constant dense<0xFF800000> : vector<256xf32>
    %44 = vector.multi_reduction <maximumf>, %12, %cst_13 [0] : vector<8x256xf32> to vector<256xf32>
    %45 = vector.shape_cast %44 : vector<256xf32> to vector<1x256xf32>
    %46 = vector.broadcast %45 : vector<1x256xf32> to vector<8x256xf32>
    %47 = arith.subf %12, %46 : vector<8x256xf32>
    %48 = math.exp %47 : vector<8x256xf32>
    %cst_14 = arith.constant dense<0.000000e+00> : vector<256xf32>
    %49 = vector.multi_reduction <add>, %48, %cst_14 [0] : vector<8x256xf32> to vector<256xf32>
    %50 = vector.shape_cast %49 : vector<256xf32> to vector<1x256xf32>
    %51 = math.log %50 : vector<1x256xf32>
    %52 = arith.addf %45, %51 : vector<1x256xf32>
    %53 = arith.subf %52, %15 : vector<1x256xf32>
    %54 = vector.extract_strided_slice %11 {offsets = [8, 0], sizes = [8, 256], strides = [1, 1]} : vector<16x256xf32> to vector<8x256xf32>
    %55 = arith.mulf %4, %54 : vector<8x256xf32>
    %cst_15 = arith.constant dense<0.000000e+00> : vector<256xf32>
    %56 = vector.multi_reduction <add>, %55, %cst_15 [0] : vector<8x256xf32> to vector<256xf32>
    %57 = vector.shape_cast %56 : vector<256xf32> to vector<1x256xf32>
    %cst_16 = arith.constant 0.000000e+00 : f32
    %58 = vector.broadcast %cst_16 : f32 to vector<8x256xf32>
    %59 = arith.maximumf %54, %58 : vector<8x256xf32>
    %cst_17 = arith.constant dense<0.000000e+00> : vector<256xf32>
    %60 = vector.multi_reduction <add>, %59, %cst_17 [0] : vector<8x256xf32> to vector<256xf32>
    %61 = vector.shape_cast %60 : vector<256xf32> to vector<1x256xf32>
    %62 = math.absf %54 : vector<8x256xf32>
    %cst_18 = arith.constant 0.000000e+00 : f32
    %63 = vector.broadcast %cst_18 : f32 to vector<8x256xf32>
    %64 = arith.subf %63, %62 : vector<8x256xf32>
    %65 = math.exp %64 : vector<8x256xf32>
    %cst_19 = arith.constant 1.000000e+00 : f32
    %66 = vector.broadcast %cst_19 : f32 to vector<8x256xf32>
    %67 = arith.addf %66, %65 : vector<8x256xf32>
    %68 = vector.extract_strided_slice %67 {offsets = [0, 0], sizes = [1, 256], strides = [1, 1]} : vector<8x256xf32> to vector<1x256xf32>
    %69 = vector.extract_strided_slice %67 {offsets = [1, 0], sizes = [1, 256], strides = [1, 1]} : vector<8x256xf32> to vector<1x256xf32>
    %70 = arith.mulf %68, %69 : vector<1x256xf32>
    %71 = vector.extract_strided_slice %67 {offsets = [2, 0], sizes = [1, 256], strides = [1, 1]} : vector<8x256xf32> to vector<1x256xf32>
    %72 = arith.mulf %70, %71 : vector<1x256xf32>
    %73 = vector.extract_strided_slice %67 {offsets = [3, 0], sizes = [1, 256], strides = [1, 1]} : vector<8x256xf32> to vector<1x256xf32>
    %74 = arith.mulf %72, %73 : vector<1x256xf32>
    %75 = vector.extract_strided_slice %67 {offsets = [4, 0], sizes = [1, 256], strides = [1, 1]} : vector<8x256xf32> to vector<1x256xf32>
    %76 = arith.mulf %74, %75 : vector<1x256xf32>
    %77 = vector.extract_strided_slice %67 {offsets = [5, 0], sizes = [1, 256], strides = [1, 1]} : vector<8x256xf32> to vector<1x256xf32>
    %78 = arith.mulf %76, %77 : vector<1x256xf32>
    %79 = vector.extract_strided_slice %67 {offsets = [6, 0], sizes = [1, 256], strides = [1, 1]} : vector<8x256xf32> to vector<1x256xf32>
    %80 = arith.mulf %78, %79 : vector<1x256xf32>
    %81 = vector.extract_strided_slice %67 {offsets = [7, 0], sizes = [1, 256], strides = [1, 1]} : vector<8x256xf32> to vector<1x256xf32>
    %82 = arith.mulf %80, %81 : vector<1x256xf32>
    %83 = math.log %82 : vector<1x256xf32>
    %84 = arith.addf %61, %83 : vector<1x256xf32>
    %85 = arith.subf %84, %57 : vector<1x256xf32>
    %cst_20 = arith.constant dense<0xFF800000> : vector<256xf32>
    %86 = vector.multi_reduction <maximumf>, %54, %cst_20 [0] : vector<8x256xf32> to vector<256xf32>
    %87 = vector.shape_cast %86 : vector<256xf32> to vector<1x256xf32>
    %88 = vector.broadcast %87 : vector<1x256xf32> to vector<8x256xf32>
    %89 = arith.subf %54, %88 : vector<8x256xf32>
    %90 = math.exp %89 : vector<8x256xf32>
    %cst_21 = arith.constant dense<0.000000e+00> : vector<256xf32>
    %91 = vector.multi_reduction <add>, %90, %cst_21 [0] : vector<8x256xf32> to vector<256xf32>
    %92 = vector.shape_cast %91 : vector<256xf32> to vector<1x256xf32>
    %93 = math.log %92 : vector<1x256xf32>
    %94 = arith.addf %87, %93 : vector<1x256xf32>
    %95 = arith.subf %94, %57 : vector<1x256xf32>
    %cst_22 = arith.constant dense<0.000000e+00> : vector<1xf32>
    %96 = vector.multi_reduction <add>, %43, %cst_22 [1] : vector<1x256xf32> to vector<1xf32>
    %97 = vector.shape_cast %96 : vector<1xf32> to vector<1x1xf32>
    %cst_23 = arith.constant dense<0.000000e+00> : vector<1xf32>
    %98 = vector.multi_reduction <add>, %85, %cst_23 [1] : vector<1x256xf32> to vector<1xf32>
    %99 = vector.shape_cast %98 : vector<1xf32> to vector<1x1xf32>
    %cst_24 = arith.constant dense<0.000000e+00> : vector<1xf32>
    %100 = vector.multi_reduction <add>, %53, %cst_24 [1] : vector<1x256xf32> to vector<1xf32>
    %101 = vector.shape_cast %100 : vector<1xf32> to vector<1x1xf32>
    %cst_25 = arith.constant dense<0.000000e+00> : vector<1xf32>
    %102 = vector.multi_reduction <add>, %95, %cst_25 [1] : vector<1x256xf32> to vector<1xf32>
    %103 = vector.shape_cast %102 : vector<1xf32> to vector<1x1xf32>
    %104 = tpu.iota {dimensions = array<i32: 0>} : vector<8x128xi32>
    %105 = tpu.iota {dimensions = array<i32: 1>} : vector<8x128xi32>
    %c0_i32_26 = arith.constant 0 : i32
    %106 = vector.broadcast %c0_i32_26 : i32 to vector<8x128xi32>
    %107 = arith.cmpi eq, %104, %106 : vector<8x128xi32>
    %c0_i32_27 = arith.constant 0 : i32
    %108 = vector.broadcast %c0_i32_27 : i32 to vector<8x128xi32>
    %109 = arith.cmpi eq, %105, %108 : vector<8x128xi32>
    %110 = arith.andi %107, %109 : vector<8x128xi1>
    %cst_28 = arith.constant 0.000000e+00 : f32
    %111 = vector.shape_cast %97 : vector<1x1xf32> to vector<1x1xf32>
    %112 = vector.broadcast %111 : vector<1x1xf32> to vector<8x128xf32>
    %113 = vector.broadcast %cst_28 : f32 to vector<8x128xf32>
    %114 = arith.select %110, %112, %113 : vector<8x128xi1>, vector<8x128xf32>
    %c0_i32_29 = arith.constant 0 : i32
    %115 = vector.broadcast %c0_i32_29 : i32 to vector<8x128xi32>
    %116 = arith.cmpi eq, %104, %115 : vector<8x128xi32>
    %c1_i32 = arith.constant 1 : i32
    %117 = vector.broadcast %c1_i32 : i32 to vector<8x128xi32>
    %118 = arith.cmpi eq, %105, %117 : vector<8x128xi32>
    %119 = arith.andi %116, %118 : vector<8x128xi1>
    %cst_30 = arith.constant 0.000000e+00 : f32
    %120 = vector.shape_cast %99 : vector<1x1xf32> to vector<1x1xf32>
    %121 = vector.broadcast %120 : vector<1x1xf32> to vector<8x128xf32>
    %122 = vector.broadcast %cst_30 : f32 to vector<8x128xf32>
    %123 = arith.select %119, %121, %122 : vector<8x128xi1>, vector<8x128xf32>
    %124 = arith.addf %114, %123 : vector<8x128xf32>
    %c0_i32_31 = arith.constant 0 : i32
    %125 = vector.broadcast %c0_i32_31 : i32 to vector<8x128xi32>
    %126 = arith.cmpi eq, %104, %125 : vector<8x128xi32>
    %c2_i32 = arith.constant 2 : i32
    %127 = vector.broadcast %c2_i32 : i32 to vector<8x128xi32>
    %128 = arith.cmpi eq, %105, %127 : vector<8x128xi32>
    %129 = arith.andi %126, %128 : vector<8x128xi1>
    %cst_32 = arith.constant 0.000000e+00 : f32
    %130 = vector.shape_cast %101 : vector<1x1xf32> to vector<1x1xf32>
    %131 = vector.broadcast %130 : vector<1x1xf32> to vector<8x128xf32>
    %132 = vector.broadcast %cst_32 : f32 to vector<8x128xf32>
    %133 = arith.select %129, %131, %132 : vector<8x128xi1>, vector<8x128xf32>
    %134 = arith.addf %124, %133 : vector<8x128xf32>
    %c0_i32_33 = arith.constant 0 : i32
    %135 = vector.broadcast %c0_i32_33 : i32 to vector<8x128xi32>
    %136 = arith.cmpi eq, %104, %135 : vector<8x128xi32>
    %c3_i32 = arith.constant 3 : i32
    %137 = vector.broadcast %c3_i32 : i32 to vector<8x128xi32>
    %138 = arith.cmpi eq, %105, %137 : vector<8x128xi32>
    %139 = arith.andi %136, %138 : vector<8x128xi1>
    %cst_34 = arith.constant 0.000000e+00 : f32
    %140 = vector.shape_cast %103 : vector<1x1xf32> to vector<1x1xf32>
    %141 = vector.broadcast %140 : vector<1x1xf32> to vector<8x128xf32>
    %142 = vector.broadcast %cst_34 : f32 to vector<8x128xf32>
    %143 = arith.select %139, %141, %142 : vector<8x128xi1>, vector<8x128xf32>
    %144 = arith.addf %134, %143 : vector<8x128xf32>
    %c0_35 = arith.constant 0 : index
    %c0_36 = arith.constant 0 : index
    %c0_37 = arith.constant 0 : index
    %145 = vector.load %arg6[%c0_35, %c0_36, %c0_37] : memref<1x8x128xf32, #tpu.memory_space<vmem>>, vector<1x8x128xf32>
    %146 = vector.shape_cast %144 : vector<8x128xf32> to vector<1x8x128xf32>
    %147 = arith.addf %145, %146 : vector<1x8x128xf32>
    %c0_38 = arith.constant 0 : index
    %c0_39 = arith.constant 0 : index
    %c0_40 = arith.constant 0 : index
    %148 = vector.load %arg6[%c0_38, %c0_39, %c0_40] : memref<1x8x128xf32, #tpu.memory_space<vmem>>, vector<1x8x128xf32>
    tpu.vector_store %arg6[%c0_38, %c0_39, %c0_40], %147 {strides = array<i32>} : memref<1x8x128xf32, #tpu.memory_space<vmem>>, vector<1x8x128xf32>,
    return
  }
  func.func @transform_0(%arg0: i32, %arg1: i32, %arg2: memref<2xi32, #tpu.memory_space<smem>>) -> (i32, i32, i32) {
    %c0_i32 = arith.constant 0 : i32
    %c0_i32_0 = arith.constant 0 : i32
    return %arg0, %c0_i32, %arg1 : i32, i32, i32
  }
  func.func @transform_1(%arg0: i32, %arg1: i32, %arg2: memref<2xi32, #tpu.memory_space<smem>>) -> (i32, i32) {
    %c0_i32 = arith.constant 0 : i32
    %c0_i32_0 = arith.constant 0 : i32
    %c0_i32_1 = arith.constant 0 : i32
    return %c0_i32, %c0_i32_0 : i32, i32
  }
  func.func @transform_2(%arg0: i32, %arg1: i32, %arg2: memref<2xi32, #tpu.memory_space<smem>>) -> (i32, i32, i32) {
    %0 = arith.index_cast %arg0 : i32 to index
    %1 = memref.load %arg2[%0] : memref<2xi32, #tpu.memory_space<smem>>
    %c0_i32 = arith.constant 0 : i32
    %c0_i32_0 = arith.constant 0 : i32
    %c0_i32_1 = arith.constant 0 : i32
    return %1, %c0_i32, %c0_i32_0 : i32, i32, i32
  }
  func.func @transform_3(%arg0: i32, %arg1: i32, %arg2: memref<2xi32, #tpu.memory_space<smem>>) -> (i32, i32, i32) {
    %c0_i32 = arith.constant 0 : i32
    %c0_i32_0 = arith.constant 0 : i32
    %c0_i32_1 = arith.constant 0 : i32
    return %arg0, %c0_i32, %c0_i32_0 : i32, i32, i32
  }
}

</mosaic_0001>

<llo_original>
// kernel: tpu_custom_call.1
$region0: #{tpu_custom_call.1}
  #allocation0 [shape = 'u32[]', space=smem, size = 0x4, offset = 0x4, fixed_abs, tag = 'smem constant byte address 0x4 - core index']
  #allocation1 [shape = 'u32[144,128]{1,0:T(1,128)}', space=vmem, size = 0x12000, scoped, tag = 'internal scratch']
  #allocation2 [shape = 's32[1]{0}', space=sflag, size = 0x4, scoped, tag = 'scoped memory for tpu_custom_call.1']
  #allocation3 [shape = 'u8[512]{0}', space=smem, size = 0x200, scoped, tag = 'prefetched SMEM operand 0']
  %s0 = inlined_call_operand.vmem [shape: s32[2], index: 0, kind: input, shape index: {}]
  %s1 = inlined_call_operand.hbm [shape: f32[2,8,256], index: 1, kind: input, shape index: {}]
  %s2 = inlined_call_operand.vmem [shape: f32[16,8], index: 2, kind: input, shape index: {}]
  %s3 = inlined_call_operand.hbm [shape: f32[5,16,128], index: 3, kind: input, shape index: {}]
  %s4 = inlined_call_operand.hbm [shape: f32[2,8,128], index: 4, kind: output, shape index: {}]
  %s5 = sld [smem:[#allocation0]]
  $region57: #{tpu_custom_call.1} parent=0
    _
  %s7 = ssub.s32 1, %s5
  %s8 = scalar_select 0, %s7, %s5
  %s9 = sshll.u32 %s0, 4
  %s10 = int_to_ptr.vmem [resolvable:$true] %s9
  %12 = dma.vmem_to_smem %s10, 16, [#allocation3], [#allocation2]
  %13 = dma.done [#allocation2], 16
  %14 = sfence
  $region1: #{tpu_custom_call.1} parent=0
    #allocation4 [shape = 'u8[16384]{0}', space=vmem, size = 0x4000, scoped, tag = 'input window, operand 1']
    #allocation5 [shape = 's32[2]{0}', space=sflag, size = 0x8, scoped, tag = 'scoped memory for tpu_custom_call.1']
    #allocation6 [shape = 's32[2]{0}', space=sflag, size = 0x8, scoped, tag = 'scoped memory for tpu_custom_call.1']
    #allocation7 [shape = 'u8[16384]{0}', space=vmem, size = 0x4000, scoped, tag = 'input window, operand 3']
    #allocation8 [shape = 's32[2]{0}', space=sflag, size = 0x8, scoped, tag = 'scoped memory for tpu_custom_call.1']
    #allocation9 [shape = 'u8[8192]{0}', space=vmem, size = 0x2000, scoped, tag = 'output window, operand 0']
    %15 = vsyncpa [#allocation5], 0
    %s16 = scalar_lea.sflag [#allocation5], 1
    %17 = vsyncpa %s16, 0
    %18 = vsyncpa [#allocation8], 0
    %s19 = scalar_lea.sflag [#allocation8], 1
    %20 = vsyncpa %s19, 0
    %21 = vsyncpa [#allocation6], 0
    %s22 = scalar_lea.sflag [#allocation6], 1
    %23 = vsyncpa %s22, 0
    loop: start=0, step=1, limit=4
    $region2: #{tpu_custom_call.1} parent=1 // loop_pre_header
      _
    $region3: #{tpu_custom_call.1} parent=1 // loop_header
      %s25 = sphi 0, %s29
      %p26 = scmp.ge.s32.totalorder %s25, 4
      %s32 = sphi 0, %s44
      %s33 = sphi 0, %s40
      %s34 = sphi 0, %s32
      %s35 = sphi 0, %s33
      %s36 = sphi 0, %s34
      %s37 = sphi 0, %s35
      %s49 = sphi 0, %s51
      %s52 = sphi 0, %s49
      %s53 = sphi 0, %s52
      %s69 = sphi 0, %s53
      %s73 = sphi 0, %s73
      %s75 = sphi 0, %s73
      %s76 = sphi 0, %s75
      %s90 = sphi 0, %s76
      %s98 = sphi 0, %s100
      %s101 = sphi 0, %s98
      %s102 = sphi 0, %s101
      %s118 = sphi 0, %s102
      %s124 = sphi 0, %s126
      %s127 = sphi 0, %s124
      %s128 = sphi 0, %s127
      %s144 = sphi 0, %s128
    $region4: #{tpu_custom_call.1} parent=1 // loop_header_branch
      %28 = sbr.rel (%p26) target = $region8
    $region5: #{tpu_custom_call.1} parent=1 // loop_body
      %s30 = ssub.s32 %s25, 1
      %s31 = ssub.s32 %s25, 2
      %s38 = sadd.s32 1, %s33
      %p39 = scmp.ge.s32.totalorder %s38, 1
      %s40 = scalar_select %p39, 0, %s38
      %s41 = sadd.s32 1, %s32
      %s42 = scalar_select %p39, %s41, %s32
      %p43 = scmp.ge.s32.totalorder %s42, 2
      %s44 = scalar_select %p43, 0, %s42
      %s45 = ssub.s32 %s32, %s44
      %s46 = ssub.s32 %s33, %s40
      %s47 = sor.u32 %s45, %s46
      %p48 = scmp.eq.s32.totalorder %s47, 0
      %s50 = sadd.s32 %s49, 1
      %s51 = scalar_select %p48, %s49, %s50
      %p54 = pneg %p48
      %p55 = scmp.eq.s32.totalorder %s25, 1
      %p56 = por %p54, %p55
      %p57 = scmp.ne.s32.totalorder %s49, %s52
      %p58 = scmp.eq.s32.totalorder %s25, 0
      %p59 = por %p57, %p58
      %p60 = scmp.ne.s32.totalorder %s49, %s52
      %p61 = scmp.eq.s32.totalorder %s30, 1
      %p62 = por %p60, %p61
      %p63 = scmp.ne.s32.totalorder %s52, %s53
      %p64 = scmp.eq.s32.totalorder %s30, 0
      %p65 = por %p63, %p64
      %p66 = scmp.ne.s32.totalorder %s52, %s53
      %p67 = scmp.eq.s32.totalorder %s31, 1
      %p68 = por %p66, %p67
      %p70 = scmp.ne.s32.totalorder %s53, %s69
      %p71 = scmp.eq.s32.totalorder %s31, 0
      %p72 = por %p70, %p71
      %s74 = sadd.s32 %s73, 1
      %p77 = scmp.eq.s32.totalorder %s25, 1
      %p78 = scmp.ne.s32.totalorder %s73, %s75
      %p79 = scmp.eq.s32.totalorder %s25, 0
      %p80 = por %p78, %p79
      %p81 = scmp.ne.s32.totalorder %s73, %s75
      %p82 = scmp.eq.s32.totalorder %s30, 1
      %p83 = por %p81, %p82
      %p84 = scmp.ne.s32.totalorder %s75, %s76
      %p85 = scmp.eq.s32.totalorder %s30, 0
      %p86 = por %p84, %p85
      %p87 = scmp.ne.s32.totalorder %s75, %s76
      %p88 = scmp.eq.s32.totalorder %s31, 1
      %p89 = por %p87, %p88
      %p91 = scmp.ne.s32.totalorder %s76, %s90
      %p92 = scmp.eq.s32.totalorder %s31, 0
      %p93 = por %p91, %p92
      %s94 = sld [smem:[#allocation3 + %s32]]
      %s95 = sld [smem:[#allocation3 + %s44]]
      %s96 = ssub.s32 %s94, %s95
      %p97 = scmp.eq.s32.totalorder %s96, 0
      %s99 = sadd.s32 %s98, 1
      %s100 = scalar_select %p97, %s98, %s99
      %p103 = pneg %p97
      %p104 = scmp.eq.s32.totalorder %s25, 1
      %p105 = por %p103, %p104
      %p106 = scmp.ne.s32.totalorder %s98, %s101
      %p107 = scmp.eq.s32.totalorder %s25, 0
      %p108 = por %p106, %p107
      %p109 = scmp.ne.s32.totalorder %s98, %s101
      %p110 = scmp.eq.s32.totalorder %s30, 1
      %p111 = por %p109, %p110
      %p112 = scmp.ne.s32.totalorder %s101, %s102
      %p113 = scmp.eq.s32.totalorder %s30, 0
      %p114 = por %p112, %p113
      %p115 = scmp.ne.s32.totalorder %s101, %s102
      %p116 = scmp.eq.s32.totalorder %s31, 1
      %p117 = por %p115, %p116
      %p119 = scmp.ne.s32.totalorder %s102, %s118
      %p120 = scmp.eq.s32.totalorder %s31, 0
      %p121 = por %p119, %p120
      %s122 = ssub.s32 %s32, %s44
      %p123 = scmp.eq.s32.totalorder %s122, 0
      %s125 = sadd.s32 %s124, 1
      %s126 = scalar_select %p123, %s124, %s125
      %p129 = pneg %p123
      %p130 = scmp.eq.s32.totalorder %s25, 1
      %p131 = por %p129, %p130
      %p132 = scmp.ne.s32.totalorder %s124, %s127
      %p133 = scmp.eq.s32.totalorder %s25, 0
      %p134 = por %p132, %p133
      %p135 = scmp.ne.s32.totalorder %s124, %s127
      %p136 = scmp.eq.s32.totalorder %s30, 1
      %p137 = por %p135, %p136
      %p138 = scmp.ne.s32.totalorder %s127, %s128
      %p139 = scmp.eq.s32.totalorder %s30, 0
      %p140 = por %p138, %p139
      %p141 = scmp.ne.s32.totalorder %s127, %s128
      %p142 = scmp.eq.s32.totalorder %s31, 1
      %p143 = por %p141, %p142
      %p145 = scmp.ne.s32.totalorder %s128, %s144
      %p146 = scmp.eq.s32.totalorder %s31, 0
      %p147 = por %p145, %p146
      %p148 = scmp.le.s32.totalorder 1, %s25
      %p149 = scmp.lt.s32.totalorder %s25, 3
      %p150 = pnand %p148, %p149
      %p151 = pneg %p150
      // Predicated region
      $region9: #{tpu_custom_call.1} parent=5 // pred_check
        _
      $region10: #{tpu_custom_call.1} parent=5 // pred_check_branch
        %153 = sbr.rel (%p150) target = $region12
      $region11: #{tpu_custom_call.1} parent=5 // pred_region
        %s154 = ssub.s32 %s25, 1
        // Predicated region
        $region13: #{tpu_custom_call.1} parent=11 // pred_check
          %p155 = pneg %p86
        $region14: #{tpu_custom_call.1} parent=11 // pred_check_branch
          %157 = sbr.rel (%p155) target = $region16
        $region15: #{tpu_custom_call.1} parent=11 // pred_region
          _
        $region16: #{tpu_custom_call.1} parent=11 // pred_fallthru
          _
      $region12: #{tpu_custom_call.1} parent=5 // pred_fallthru
        _
      %p158 = scmp.lt.s32.totalorder %s25, 2
      // Predicated region
      $region17: #{tpu_custom_call.1} parent=5 // pred_check
        %p159 = pneg %p158
      $region18: #{tpu_custom_call.1} parent=5 // pred_check_branch
        %161 = sbr.rel (%p159) target = $region20
      $region19: #{tpu_custom_call.1} parent=5 // pred_region
        // Predicated region
        $region21: #{tpu_custom_call.1} parent=19 // pred_check
          %p162 = pneg %p59
        $region22: #{tpu_custom_call.1} parent=19 // pred_check_branch
          %164 = sbr.rel (%p162) target = $region24
        $region23: #{tpu_custom_call.1} parent=19 // pred_region
          %s165 = sand.u32 %s49, 1
          %s166 = scalar_lea.sflag [#allocation5], %s165
          %s167 = sand.u32 %s49, 1
          %s168 = smul.addr %s167, 16
          %s169 = scalar_lea.vmem [#allocation4], %s168
          %s170 = smul.u32 2, %s33
          %s172 = ssub.s32 256, 256
          %173 = vsyncadd %s166, %s172
          %s174 = smul.addr %s32, 2
          %s175 = sadd.s32 %s170, %s174
          %s176 = smul.addr %s175, 128
          %s177 = scalar_lea.hbm %s1, %s176
          %s179 = sshll.u32 %s169, 4
          %s180 = int_to_ptr.vmem [resolvable:$true] %s179
          %182 = dma.hbm_to_vmem [thread:$0]  %s177, 256, %s180, %s166
        $region24: #{tpu_custom_call.1} parent=19 // pred_fallthru
          _
        // Predicated region
        $region25: #{tpu_custom_call.1} parent=19 // pred_check
          %p183 = pneg %p108
        $region26: #{tpu_custom_call.1} parent=19 // pred_check_branch
          %185 = sbr.rel (%p183) target = $region28
        $region27: #{tpu_custom_call.1} parent=19 // pred_region
          %s186 = sand.u32 %s98, 1
          %s187 = scalar_lea.sflag [#allocation8], %s186
          %s188 = sand.u32 %s98, 1
          %s189 = smul.addr %s188, 16
          %s190 = scalar_lea.vmem [#allocation7], %s189
          %s191 = sld [smem:[#allocation3 + %s32]]
          %s193 = ssub.s32 256, 256
          %194 = vsyncadd %s187, %s193
          %s195 = smul.addr %s191, 2
          %s196 = smul.addr %s195, 128
          %s197 = scalar_lea.hbm %s3, %s196
          %s198 = sshll.u32 %s190, 4
          %s199 = int_to_ptr.vmem [resolvable:$true] %s198
          %204 = dma.hbm_to_vmem [thread:$0]  %s197, 256, %s199, %s187, 128, 128, 8
        $region28: #{tpu_custom_call.1} parent=19 // pred_fallthru
          _
      $region20: #{tpu_custom_call.1} parent=5 // pred_fallthru
        _
      %p205 = scmp.le.s32.totalorder 1, %s25
      %p206 = scmp.lt.s32.totalorder %s25, 3
      %p207 = pnand %p205, %p206
      %p208 = pneg %p207
      // Predicated region
      $region29: #{tpu_custom_call.1} parent=5 // pred_check
        _
      $region30: #{tpu_custom_call.1} parent=5 // pred_check_branch
        %210 = sbr.rel (%p207) target = $region32
      $region31: #{tpu_custom_call.1} parent=5 // pred_region
        %s211 = ssub.s32 %s25, 1
        %s212 = sand.u32 %s52, 1
        %s213 = scalar_lea.sflag [#allocation5], %s212
        %s214 = sand.u32 %s52, 1
        %s215 = smul.addr %s214, 16
        %s216 = scalar_lea.vmem [#allocation4], %s215
        // Predicated region
        $region33: #{tpu_custom_call.1} parent=31 // pred_check
          %p217 = pneg %p65
        $region34: #{tpu_custom_call.1} parent=31 // pred_check_branch
          %219 = sbr.rel (%p217) target = $region36
        $region35: #{tpu_custom_call.1} parent=31 // pred_region
          %220 = dma.done %s213, 256
        $region36: #{tpu_custom_call.1} parent=31 // pred_fallthru
          _
        %s221 = sand.u32 %s101, 1
        %s222 = scalar_lea.sflag [#allocation8], %s221
        %s223 = sand.u32 %s101, 1
        %s224 = smul.addr %s223, 16
        %s225 = scalar_lea.vmem [#allocation7], %s224
        // Predicated region
        $region37: #{tpu_custom_call.1} parent=31 // pred_check
          %p226 = pneg %p114
        $region38: #{tpu_custom_call.1} parent=31 // pred_check_branch
          %228 = sbr.rel (%p226) target = $region40
        $region39: #{tpu_custom_call.1} parent=31 // pred_region
          %229 = dma.done %s222, 256
        $region40: #{tpu_custom_call.1} parent=31 // pred_fallthru
          _
        %s230 = sand.u32 %s52, 1
        %s231 = scalar_lea.sflag [#allocation5], %s230
        %s232 = sand.u32 %s52, 1
        %s233 = smul.addr %s232, 16
        %s234 = scalar_lea.vmem [#allocation4], %s233
        %p235 = pneg %p65
        %p236 = pneg %p62
        %p237 = pneg %p86
        %p238 = pneg %p83
        %s239 = sand.u32 %s101, 1
        %s240 = scalar_lea.sflag [#allocation8], %s239
        %s241 = sand.u32 %s101, 1
        %s242 = smul.addr %s241, 16
        %s243 = scalar_lea.vmem [#allocation7], %s242
        %p244 = pneg %p114
        %p245 = pneg %p111
        %p246 = pneg %p140
        %p247 = pneg %p137
        %s248 = sand.u32 %s127, 1
        %s249 = scalar_lea.sflag [#allocation6], %s248
        %s250 = sand.u32 %s127, 1
        %s251 = smul.addr %s250, 8
        %s252 = scalar_lea.vmem [#allocation9], %s251
        %s253 = smul.u32 2, %s35
        %s254 = sld [smem:[#allocation3 + %s34]]
        %p255 = scmp.eq.s32.totalorder %s35, 0
        // Predicated region
        $region41: #{tpu_custom_call.1} parent=31 // pred_check
          %p256 = pneg %p255
        $region42: #{tpu_custom_call.1} parent=31 // pred_check_branch
          %258 = sbr.rel (%p256) target = $region44
        $region43: #{tpu_custom_call.1} parent=31 // pred_region
          %259 = vst [vmem:[%s252] sm:$0xff] 0.0
        $region44: #{tpu_custom_call.1} parent=31 // pred_fallthru
          _
        %v260 = vld [vmem:[%s216] sm:$0xff]
        %v261 = vld [vmem:[%s216 + $0x8] sm:$0xff]
        %v262 = vld [vmem:[%s225] sm:$0xff]
        %v263 = vld [vmem:[%s225 + $0x8] sm:$0xff]
        %v264 = vld [vmem:[%s2] sm:$0xff]
        %v265 = vld [vmem:[%s2 + $0x8] sm:$0xff]
        %267 = vset.pattern.permute.xlu0 0
        %268 = vperm.xlu0 %267, %v262
        %v269 = vpop.permute.xlu0 %268
        %272 = vset.pattern.permute.xlu0 0
        %273 = vperm.xlu0 %272, %v263
        %v274 = vpop.permute.xlu0 %273
        %vm276 = vcmask 64512
        %v278 = vsel %vm276, %v264, 0
        %v281 = vsel %vm276, %v265, 0
        %283 = vmatprep.subr.mxu0 %v261
        %284 = vmatpush1.msra.mxu0 %v260
        %285 = vmatprep.subr.mxu0 0.0
        %286 = vmatpush1.msra.mxu0 0.0
        %287 = vmatprep.subr.mxu0 0.0
        %288 = vmatpush1.msra.mxu0 0.0
        %289 = vmatprep.subr.mxu0 0.0
        %290 = vmatpush1.msra.mxu0 0.0
        %291 = vmatprep.subr.mxu0 0.0
        %292 = vmatpush1.msra.mxu0 0.0
        %293 = vmatprep.subr.mxu0 0.0
        %294 = vmatpush1.msra.mxu0 0.0
        %295 = vmatprep.subr.mxu0 0.0
        %296 = vmatpush1.msra.mxu0 0.0
        %297 = vmatprep.subr.mxu0 0.0
        %298 = vmatpush1.msra.mxu0 0.0
        %299 = vmatprep.subr.mxu0 0.0
        %300 = vmatpush1.msra.mxu0 0.0
        %301 = vmatprep.subr.mxu0 0.0
        %302 = vmatpush1.msra.mxu0 0.0
        %303 = vmatprep.subr.mxu0 0.0
        %304 = vmatpush1.msra.mxu0 0.0
        %305 = vmatprep.subr.mxu0 0.0
        %306 = vmatpush1.msra.mxu0 0.0
        %307 = vmatprep.subr.mxu0 0.0
        %308 = vmatpush1.msra.mxu0 0.0
        %309 = vmatprep.subr.mxu0 0.0
        %310 = vmatpush1.msra.mxu0 0.0
        %311 = vmatprep.subr.mxu0 0.0
        %312 = vmatpush1.msra.mxu0 0.0
        %313 = vmatprep.subr.mxu0 0.0
        %314 = vmatpush1.msra.mxu0 0.0
        %315 = vmatprep.subr.mxu0 0.0
        %316 = vmatpush1.msra.mxu0 0.0
        %317 = vmatprep.subr.mxu0 0.0
        %318 = vmatpush1.msra.mxu0 0.0
        %319 = vmatprep.subr.mxu0 0.0
        %320 = vmatpush1.msra.mxu0 0.0
        %321 = vmatprep.subr.mxu0 0.0
        %322 = vmatpush1.msra.mxu0 0.0
        %323 = vmatprep.subr.mxu0 0.0
        %324 = vmatpush1.msra.mxu0 0.0
        %325 = vmatprep.subr.mxu0 0.0
        %326 = vmatpush1.msra.mxu0 0.0
        %327 = vmatprep.subr.mxu0 0.0
        %328 = vmatpush1.msra.mxu0 0.0
        %329 = vmatprep.subr.mxu0 0.0
        %330 = vmatpush1.msra.mxu0 0.0
        %331 = vmatprep.subr.mxu0 0.0
        %332 = vmatpush1.msra.mxu0 0.0
        %333 = vmatprep.subr.mxu0 0.0
        %334 = vmatpush1.msra.mxu0 0.0
        %335 = vmatprep.subr.mxu0 0.0
        %336 = vmatpush1.msra.mxu0 0.0
        %337 = vmatprep.subr.mxu0 0.0
        %338 = vmatpush1.msra.mxu0 0.0
        %339 = vmatprep.subr.mxu0 0.0
        %340 = vmatpush1.msra.mxu0 0.0
        %341 = vmatprep.subr.mxu0 0.0
        %342 = vmatpush1.msra.mxu0 0.0
        %343 = vmatprep.subr.mxu0 0.0
        %344 = vmatpush1.msra.mxu0 0.0
        %345 = vmatprep.subr.mxu0 0.0
        %346 = vmatpush1.msra.mxu0 0.0
        %347 = vmatprep.mubr.f32.mxu0 0.0
        %348 = vmatmul.mubr.f32.gmra.mrb[0].mxu0 %v278
        %v349 = vpop.f32.mrb[0].mxu0
        %v350 = vadd.f32 %v269, %v349
        %v351 = vpop.f32.mrb[0].mxu0
        %v352 = vadd.f32 %v269, %v351
        %353 = vmatprep.mubr.f32.mxu0 0.0
        %354 = vmatmul.mubr.f32.gmra.mrb[0].mxu0 %v281
        %v355 = vpop.f32.mrb[0].mxu0
        %v356 = vadd.f32 %v274, %v355
        %v357 = vpop.f32.mrb[0].mxu0
        %v358 = vadd.f32 %v274, %v357
        %359 = vdwg.mxu0
        %v360 = vmul.f32 %v260, %v350
        %v361 = vmul.f32 %v261, %v352
        %v362 = vrot.slane %v360, 4
        %v363 = vadd.f32 %v360, %v362
        %v364 = vrot.slane %v363, 2
        %v365 = vadd.f32 %v363, %v364
        %v366 = vrot.slane %v365, 1
        %v367 = vadd.f32 %v365, %v366
        %v368 = vrot.slane %v361, 4
        %v369 = vadd.f32 %v361, %v368
        %v370 = vrot.slane %v369, 2
        %v371 = vadd.f32 %v369, %v370
        %v372 = vrot.slane %v371, 1
        %v373 = vadd.f32 %v371, %v372
        %v374 = vmax.f32 %v350, 0.0
        %v375 = vmax.f32 %v352, 0.0
        %v376 = vrot.slane %v374, 4
        %v377 = vadd.f32 %v374, %v376
        %v378 = vrot.slane %v377, 2
        %v379 = vadd.f32 %v377, %v378
        %v380 = vrot.slane %v379, 1
        %v381 = vadd.f32 %v379, %v380
        %v382 = vrot.slane %v375, 4
        %v383 = vadd.f32 %v375, %v382
        %v384 = vrot.slane %v383, 2
        %v385 = vadd.f32 %v383, %v384
        %v386 = vrot.slane %v385, 1
        %v387 = vadd.f32 %v385, %v386
        %v388 = vand.u32 2147483647, %v350
        %v389 = vand.u32 2147483647, %v352
        %v390 = vsub.f32 0.0, %v388
        %v391 = vsub.f32 0.0, %v389
        %v392 = vmul.f32 %v390, 1.442695
        %v393 = vpow.pop %v392
        %v394 = vmul.f32 %v391, 1.442695
        %v395 = vpow.pop %v394
        %v396 = vadd.f32 %v393, 1.0
        %v397 = vadd.f32 %v395, 1.0
        %v400 = vrot.slane %v396, 1
        %v401 = vrot.slane %v397, 1
        %v404 = vmul.f32 %v396, %v400
        %v405 = vmul.f32 %v397, %v401
        %v406 = vrot.slane %v396, 2
        %v407 = vrot.slane %v397, 2
        %v410 = vmul.f32 %v404, %v406
        %v411 = vmul.f32 %v405, %v407
        %v412 = vrot.slane %v396, 3
        %v413 = vrot.slane %v397, 3
        %v416 = vmul.f32 %v410, %v412
        %v417 = vmul.f32 %v411, %v413
        %v418 = vrot.slane %v396, 4
        %v419 = vrot.slane %v397, 4
        %v422 = vmul.f32 %v416, %v418
        %v423 = vmul.f32 %v417, %v419
        %v424 = vrot.slane %v396, 5
        %v425 = vrot.slane %v397, 5
        %v428 = vmul.f32 %v422, %v424
        %v429 = vmul.f32 %v423, %v425
        %v430 = vrot.slane %v396, 6
        %v431 = vrot.slane %v397, 6
        %v434 = vmul.f32 %v428, %v430
        %v435 = vmul.f32 %v429, %v431
        %v436 = vrot.slane %v396, 7
        %v437 = vrot.slane %v397, 7
        %v440 = vmul.f32 %v434, %v436
        %v441 = vmul.f32 %v435, %v437
        %v442 = vlog2.pop %v440
        %v443 = vmul.f32 %v442, 0.6931472
        %v444 = vlog2.pop %v441
        %v445 = vmul.f32 %v444, 0.6931472
        %v446 = vadd.f32 %v381, %v443
        %v447 = vadd.f32 %v387, %v445
        %v448 = vsub.f32 %v446, %v367
        %v449 = vsub.f32 %v447, %v373
        %v450 = vrot.slane %v350, 4
        %v451 = vmax.f32 %v350, %v450
        %v452 = vrot.slane %v451, 2
        %v453 = vmax.f32 %v451, %v452
        %v454 = vrot.slane %v453, 1
        %v455 = vmax.f32 %v453, %v454
        %v456 = vrot.slane %v352, 4
        %v457 = vmax.f32 %v352, %v456
        %v458 = vrot.slane %v457, 2
        %v459 = vmax.f32 %v457, %v458
        %v460 = vrot.slane %v459, 1
        %v461 = vmax.f32 %v459, %v460
        %v462 = vsub.f32 %v350, %v455
        %v463 = vsub.f32 %v352, %v461
        %v464 = vmul.f32 %v462, 1.442695
        %v465 = vpow.pop %v464
        %v466 = vmul.f32 %v463, 1.442695
        %v467 = vpow.pop %v466
        %v468 = vrot.slane %v465, 4
        %v469 = vadd.f32 %v465, %v468
        %v470 = vrot.slane %v469, 2
        %v471 = vadd.f32 %v469, %v470
        %v472 = vrot.slane %v471, 1
        %v473 = vadd.f32 %v471, %v472
        %v474 = vrot.slane %v467, 4
        %v475 = vadd.f32 %v467, %v474
        %v476 = vrot.slane %v475, 2
        %v477 = vadd.f32 %v475, %v476
        %v478 = vrot.slane %v477, 1
        %v479 = vadd.f32 %v477, %v478
        %v480 = vlog2.pop %v473
        %v481 = vmul.f32 %v480, 0.6931472
        %v482 = vlog2.pop %v479
        %v483 = vmul.f32 %v482, 0.6931472
        %v484 = vadd.f32 %v455, %v481
        %v485 = vadd.f32 %v461, %v483
        %v486 = vsub.f32 %v484, %v367
        %v487 = vsub.f32 %v485, %v373
        %v488 = vmul.f32 %v260, %v356
        %v489 = vmul.f32 %v261, %v358
        %v490 = vrot.slane %v488, 4
        %v491 = vadd.f32 %v488, %v490
        %v492 = vrot.slane %v491, 2
        %v493 = vadd.f32 %v491, %v492
        %v494 = vrot.slane %v493, 1
        %v495 = vadd.f32 %v493, %v494
        %v496 = vrot.slane %v489, 4
        %v497 = vadd.f32 %v489, %v496
        %v498 = vrot.slane %v497, 2
        %v499 = vadd.f32 %v497, %v498
        %v500 = vrot.slane %v499, 1
        %v501 = vadd.f32 %v499, %v500
        %v502 = vmax.f32 %v356, 0.0
        %v503 = vmax.f32 %v358, 0.0
        %v504 = vrot.slane %v502, 4
        %v505 = vadd.f32 %v502, %v504
        %v506 = vrot.slane %v505, 2
        %v507 = vadd.f32 %v505, %v506
        %v508 = vrot.slane %v507, 1
        %v509 = vadd.f32 %v507, %v508
        %v510 = vrot.slane %v503, 4
        %v511 = vadd.f32 %v503, %v510
        %v512 = vrot.slane %v511, 2
        %v513 = vadd.f32 %v511, %v512
        %v514 = vrot.slane %v513, 1
        %v515 = vadd.f32 %v513, %v514
        %v516 = vand.u32 2147483647, %v356
        %v517 = vand.u32 2147483647, %v358
        %v518 = vsub.f32 0.0, %v516
        %v519 = vsub.f32 0.0, %v517
        %v520 = vmul.f32 %v518, 1.442695
        %v521 = vpow.pop %v520
        %v522 = vmul.f32 %v519, 1.442695
        %v523 = vpow.pop %v522
        %v524 = vadd.f32 %v521, 1.0
        %v525 = vadd.f32 %v523, 1.0
        %v528 = vrot.slane %v524, 1
        %v529 = vrot.slane %v525, 1
        %v532 = vmul.f32 %v524, %v528
        %v533 = vmul.f32 %v525, %v529
        %v534 = vrot.slane %v524, 2
        %v535 = vrot.slane %v525, 2
        %v538 = vmul.f32 %v532, %v534
        %v539 = vmul.f32 %v533, %v535
        %v540 = vrot.slane %v524, 3
        %v541 = vrot.slane %v525, 3
        %v544 = vmul.f32 %v538, %v540
        %v545 = vmul.f32 %v539, %v541
        %v546 = vrot.slane %v524, 4
        %v547 = vrot.slane %v525, 4
        %v550 = vmul.f32 %v544, %v546
        %v551 = vmul.f32 %v545, %v547
        %v552 = vrot.slane %v524, 5
        %v553 = vrot.slane %v525, 5
        %v556 = vmul.f32 %v550, %v552
        %v557 = vmul.f32 %v551, %v553
        %v558 = vrot.slane %v524, 6
        %v559 = vrot.slane %v525, 6
        %v562 = vmul.f32 %v556, %v558
        %v563 = vmul.f32 %v557, %v559
        %v564 = vrot.slane %v524, 7
        %v565 = vrot.slane %v525, 7
        %v568 = vmul.f32 %v562, %v564
        %v569 = vmul.f32 %v563, %v565
        %v570 = vlog2.pop %v568
        %v571 = vmul.f32 %v570, 0.6931472
        %v572 = vlog2.pop %v569
        %v573 = vmul.f32 %v572, 0.6931472
        %v574 = vadd.f32 %v509, %v571
        %v575 = vadd.f32 %v515, %v573
        %v576 = vsub.f32 %v574, %v495
        %v577 = vsub.f32 %v575, %v501
        %v578 = vrot.slane %v356, 4
        %v579 = vmax.f32 %v356, %v578
        %v580 = vrot.slane %v579, 2
        %v581 = vmax.f32 %v579, %v580
        %v582 = vrot.slane %v581, 1
        %v583 = vmax.f32 %v581, %v582
        %v584 = vrot.slane %v358, 4
        %v585 = vmax.f32 %v358, %v584
        %v586 = vrot.slane %v585, 2
        %v587 = vmax.f32 %v585, %v586
        %v588 = vrot.slane %v587, 1
        %v589 = vmax.f32 %v587, %v588
        %v590 = vsub.f32 %v356, %v583
        %v591 = vsub.f32 %v358, %v589
        %v592 = vmul.f32 %v590, 1.442695
        %v593 = vpow.pop %v592
        %v594 = vmul.f32 %v591, 1.442695
        %v595 = vpow.pop %v594
        %v596 = vrot.slane %v593, 4
        %v597 = vadd.f32 %v593, %v596
        %v598 = vrot.slane %v597, 2
        %v599 = vadd.f32 %v597, %v598
        %v600 = vrot.slane %v599, 1
        %v601 = vadd.f32 %v599, %v600
        %v602 = vrot.slane %v595, 4
        %v603 = vadd.f32 %v595, %v602
        %v604 = vrot.slane %v603, 2
        %v605 = vadd.f32 %v603, %v604
        %v606 = vrot.slane %v605, 1
        %v607 = vadd.f32 %v605, %v606
        %v608 = vlog2.pop %v601
        %v609 = vmul.f32 %v608, 0.6931472
        %v610 = vlog2.pop %v607
        %v611 = vmul.f32 %v610, 0.6931472
        %v612 = vadd.f32 %v583, %v609
        %v613 = vadd.f32 %v589, %v611
        %v614 = vsub.f32 %v612, %v495
        %v615 = vsub.f32 %v613, %v501
        %vm616 = vcmask 1040384
        %v617 = vsel %vm616, %v448, 0.0
        %v618 = vsel %vm616, %v449, 0.0
        %v619 = vadd.f32 %v617, %v618
        %620 = vadd.xlane.f32.xlu0 %v619
        %v621 = vpop.xlane.xlu0 %620
        %v622 = vsel %vm616, %v576, 0.0
        %v623 = vsel %vm616, %v577, 0.0
        %v624 = vadd.f32 %v622, %v623
        %625 = vadd.xlane.f32.xlu0 %v624
        %v626 = vpop.xlane.xlu0 %625
        %v627 = vadd.f32 %v486, %v487
        %628 = vadd.xlane.f32.xlu0 %v627
        %v629 = vpop.xlane.xlu0 %628
        %v630 = vadd.f32 %v614, %v615
        %631 = vadd.xlane.f32.xlu0 %v630
        %v632 = vpop.xlane.xlu0 %631
        %v633 = vlaneseq
        %v634 = vshrl.u32 %v633, 7
        %v635 = vlaneseq
        %v636 = vand.u32 %v635, 127
        %vm637 = vcmp.eq.s32.totalorder %v634, 0
        %vm638 = vcmp.eq.s32.totalorder %v636, 0
        %vm639 = vmand %vm637, %vm638
        %v640 = vlaneseq
        %v641 = vshrl.u32 %v640, 7
        %v642 = vsub.s32 0, %v641
        %v643 = vrot.slane %v621, %v642
        %v644 = vsel %vm639, %v643, 0.0
        %vm645 = vcmp.eq.s32.totalorder %v636, 1
        %vm646 = vmand %vm637, %vm645
        %v647 = vlaneseq
        %v648 = vshrl.u32 %v647, 7
        %v649 = vsub.s32 0, %v648
        %v650 = vrot.slane %v626, %v649
        %v651 = vsel %vm646, %v650, 0.0
        %v652 = vadd.f32 %v644, %v651
        %vm653 = vcmp.eq.s32.totalorder %v636, 2
        %vm654 = vmand %vm637, %vm653
        %v655 = vsel %vm654, %v629, 0.0
        %v656 = vadd.f32 %v652, %v655
        %vm657 = vcmp.eq.s32.totalorder %v636, 3
        %vm658 = vmand %vm637, %vm657
        %v659 = vsel %vm658, %v632, 0.0
        %v660 = vadd.f32 %v656, %v659
        %v661 = vld [vmem:[%s252] sm:$0xff]
        %v662 = vadd.f32 %v661, %v660
        %663 = vst [vmem:[%s252] sm:$0xff] %v662
        %s664 = sand.u32 %s127, 1
        %s665 = scalar_lea.sflag [#allocation6], %s664
        %s666 = sand.u32 %s127, 1
        %s667 = smul.addr %s666, 8
        %s668 = scalar_lea.vmem [#allocation9], %s667
        // Predicated region
        $region45: #{tpu_custom_call.1} parent=31 // pred_check
          %p669 = pneg %p137
        $region46: #{tpu_custom_call.1} parent=31 // pred_check_branch
          %671 = sbr.rel (%p669) target = $region48
        $region47: #{tpu_custom_call.1} parent=31 // pred_region
          %s673 = ssub.s32 128, 128
          %674 = vsyncadd %s665, %s673
          %s675 = smul.addr %s34, 128
          %s676 = scalar_lea.hbm %s4, %s675
          %s678 = sshll.u32 %s668, 4
          %s679 = int_to_ptr.vmem [resolvable:$true] %s678
          %681 = dma.vmem_to_hbm [thread:$0]  %s679, 128, %s676, %s665
        $region48: #{tpu_custom_call.1} parent=31 // pred_fallthru
          _
      $region32: #{tpu_custom_call.1} parent=5 // pred_fallthru
        _
      %p682 = scmp.le.s32.totalorder 2, %s25
      // Predicated region
      $region49: #{tpu_custom_call.1} parent=5 // pred_check
        %p683 = pneg %p682
      $region50: #{tpu_custom_call.1} parent=5 // pred_check_branch
        %685 = sbr.rel (%p683) target = $region52
      $region51: #{tpu_custom_call.1} parent=5 // pred_region
        %s686 = ssub.s32 %s25, 2
        // Predicated region
        $region53: #{tpu_custom_call.1} parent=51 // pred_check
          %p687 = pneg %p143
        $region54: #{tpu_custom_call.1} parent=51 // pred_check_branch
          %689 = sbr.rel (%p687) target = $region56
        $region55: #{tpu_custom_call.1} parent=51 // pred_region
          %s690 = sand.u32 %s128, 1
          %s691 = scalar_lea.sflag [#allocation6], %s690
          %s692 = sand.u32 %s128, 1
          %s693 = smul.addr %s692, 8
          %s694 = scalar_lea.vmem [#allocation9], %s693
          %695 = dma.done %s691, 128
        $region56: #{tpu_custom_call.1} parent=51 // pred_fallthru
          _
      $region52: #{tpu_custom_call.1} parent=5 // pred_fallthru
        _
    $region6: #{tpu_custom_call.1} parent=1 // loop_footer
      %s29 = sadd.s32 1, %s25
    $region7: #{tpu_custom_call.1} parent=1 // loop_footer_branch
      %24 = sbr.rel target = $region3
    $region8: #{tpu_custom_call.1} parent=1 // loop_exit
      _
    %696 = vsyncpa [#allocation5], 1
    %s697 = scalar_lea.sflag [#allocation5], 1
    %698 = vsyncpa %s697, 1
    %699 = vsyncpa [#allocation8], 1
    %s700 = scalar_lea.sflag [#allocation8], 1
    %701 = vsyncpa %s700, 1
    %702 = vsyncpa [#allocation6], 1
    %s703 = scalar_lea.sflag [#allocation6], 1
    %704 = vsyncpa %s703, 1

</llo_original>
